<compile_context>
chip_gen: v7x
topology: tpu7x:2x2x1
jax: 0.10.0
libtpu: 0.0.40
codegen_flags: <defaults>
</compile_context>

<pallas_src>
import numpy as np
import jax
import jax.numpy as jnp
from jax.experimental import pallas as pl
from jax.experimental.pallas import tpu as pltpu

B_PAD = 8        # sublane dim of activation blocks (row 0 is the real sample)
D_PAD = 128      # lane dim
# Row offsets inside the single packed constant slab.
W1_OFF, W2_OFF, W3_OFF = 0, 128, 256
B1_OFF, B2_OFF, B3_OFF, RV_OFF = 384, 392, 400, 408
C_ROWS = 416


# ------------------------------------------------------------------ Pallas kernel
def _fused_policy_kernel(seed_ref, x_ref, c_ref, out_ref):
    f32 = jnp.float32
    x = x_ref[...]                              # (8,128): row 0 = [raw state 0:4 | norm state 4:8 | 0...]

    # Tile-aligned views into the single constant slab (all offsets % 8 == 0).
    w1 = c_ref[W1_OFF:W1_OFF + 128, :]
    w2 = c_ref[W2_OFF:W2_OFF + 128, :]
    w3 = c_ref[W3_OFF:W3_OFF + 128, :]
    b1 = c_ref[B1_OFF:B1_OFF + 8, :]            # bias rows already replicated across sublanes
    b2 = c_ref[B2_OFF:B2_OFF + 8, :]
    b3 = c_ref[B3_OFF:B3_OFF + 8, :]
    rv = c_ref[RV_OFF:RV_OFF + 8, :]            # lanes 0:8 = 1 (IR path), 8:24 = random_vector, rest 1

    # Layer 1 (fused IR.fc1 + Actor.fc1), full-width MXU dot.
    h1 = jnp.tanh(jnp.dot(x, w1, preferred_element_type=f32) + b1)
    # Layer 2 (fused IR.fc2 + Actor.fc2).
    h2 = jnp.tanh(jnp.dot(h1, w2, preferred_element_type=f32) + b2)
    # Actor lanes 8:24 scaled by random_vector; IR lanes multiplied by 1.
    h2 = h2 * rv
    # Layer 3 (fused IR.fc_loc + Actor.mu).
    logits = jnp.dot(h2, w3, preferred_element_type=f32) + b3
    mu = jax.nn.sigmoid(logits)                 # lane 1 = actor mu;  logits lane 0 = intrinsic reward

    # Counter-based uniform in [0,1): murmur3 fmix32 of (position ^ stepped seed).
    # Pure int32/uint32 VPU ops -> works on TPU Mosaic and in interpret mode.
    seed_u = seed_ref[0].astype(jnp.uint32) * jnp.uint32(0x9E3779B9)
    pos = (jax.lax.broadcasted_iota(jnp.int32, (B_PAD, D_PAD), 0) * D_PAD
           + jax.lax.broadcasted_iota(jnp.int32, (B_PAD, D_PAD), 1)).astype(jnp.uint32)
    h = pos ^ seed_u
    h = h ^ (h >> 16)
    h = h * jnp.uint32(0x85EBCA6B)
    h = h ^ (h >> 13)
    h = h * jnp.uint32(0xC2B2AE35)
    h = h ^ (h >> 16)
    u = (h & jnp.uint32(0x7FFFFF)).astype(jnp.int32).astype(f32) * np.float32(1.0 / (1 << 23))

    # Three full, unmasked, tile-aligned stores into one output block.
    out_ref[0:8, :] = logits
    out_ref[8:16, :] = mu
    out_ref[16:24, :] = u


@jax.jit
def _run_step(seed, x, consts):
    return pl.pallas_call(
        _fused_policy_kernel,
        out_shape=jax.ShapeDtypeStruct((24, D_PAD), jnp.float32),
        in_specs=[
            pl.BlockSpec(memory_space=pltpu.MemorySpace.SMEM),   # seed   (1,)      int32
            pl.BlockSpec(memory_space=pltpu.MemorySpace.VMEM),   # x      (8,128)   f32
            pl.BlockSpec(memory_space=pltpu.MemorySpace.VMEM),   # consts (416,128) f32  (ONE DMA)
        ],
        out_specs=pl.BlockSpec(memory_space=pltpu.MemorySpace.VMEM),
    )(seed, x, consts)


# ------------------------------------------------------------------ parameter packing
def _init_params(key):
    """Deterministic init.  Weights are generated directly in
    (in_features, out_features) layout (== torch Linear weight.T) and packed,
    together with biases and the actor random_vector, into a single
    (416, 128) f32 constant slab:
        rows   0:128  fused layer-1 weights (IR.fc1 | Actor.fc1), zero-padded
        rows 128:256  fused layer-2 weights (IR.fc2 | Actor.fc2)
        rows 256:384  fused layer-3 weights (IR.fc_loc | Actor.mu)
        rows 384:392  fused bias 1 (replicated across 8 sublanes)
        rows 392:400  fused bias 2
        rows 400:408  fused bias 3
        rows 408:416  actor random_vector gate (1.0 on non-actor lanes)
    """
    shapes = {
        # Intrinsic_Reward
        "w1": (4, 16), "b1": (16,), "w2": (16, 8), "b2": (8,), "w3": (8, 1), "b3": (1,),
        # Actor
        "a1": (4, 32), "c1": (32,), "a2": (32, 16), "c2": (16,), "a3": (16, 1), "c3": (1,),
    }
    keys = jax.random.split(key, len(shapes) + 2)
    p = {}
    for k, (name, shp) in zip(keys[:len(shapes)], shapes.items()):
        p[name] = np.asarray(0.1 * jax.random.normal(k, shp, dtype=jnp.float32), np.float32)

    # Actor.random_vetor: rand(16)*4-2, replaced by 1.0 where gate >= 0.5.
    rv = jax.random.uniform(keys[-2], (16,), dtype=jnp.float32) * 4.0 - 2.0
    gate = jax.random.uniform(keys[-1], (16,), dtype=jnp.float32)
    rv = np.asarray(jnp.where(gate < 0.5, rv, jnp.ones((16,), jnp.float32)), np.float32)

    consts = np.zeros((C_ROWS, D_PAD), np.float32)
    # Layer 1: IR.fc1 contracts lanes 0:4 (raw state) -> cols 0:16;
    #          Actor.fc1 contracts lanes 4:8 (normalized state) -> cols 16:48.
    consts[W1_OFF + 0:W1_OFF + 4, 0:16] = p["w1"]
    consts[W1_OFF + 4:W1_OFF + 8, 16:48] = p["a1"]
    # Layer 2: IR.fc2 rows 0:16 -> cols 0:8;  Actor.fc2 rows 16:48 -> cols 8:24.
    consts[W2_OFF + 0:W2_OFF + 16, 0:8] = p["w2"]
    consts[W2_OFF + 16:W2_OFF + 48, 8:24] = p["a2"]
    # Layer 3: IR.fc_loc rows 0:8 -> col 0;  Actor.mu rows 8:24 -> col 1.
    consts[W3_OFF + 0:W3_OFF + 8, 0:1] = p["w3"]
    consts[W3_OFF + 8:W3_OFF + 24, 1:2] = p["a3"]

    b1 = np.zeros((D_PAD,), np.float32); b1[0:16] = p["b1"]; b1[16:48] = p["c1"]
    b2 = np.zeros((D_PAD,), np.float32); b2[0:8] = p["b2"]; b2[8:24] = p["c2"]
    b3 = np.zeros((D_PAD,), np.float32); b3[0] = p["b3"][0]; b3[1] = p["c3"][0]
    rvr = np.ones((D_PAD,), np.float32); rvr[8:24] = rv

    consts[B1_OFF:B1_OFF + 8, :] = b1
    consts[B2_OFF:B2_OFF + 8, :] = b2
    consts[B3_OFF:B3_OFF + 8, :] = b3
    consts[RV_OFF:RV_OFF + 8, :] = rvr

    return jnp.asarray(consts)


# ------------------------------------------------------------------ stateful host glue
class Nomalize:
    """Exact numpy semantics of the reference running normalizer (stateful, host-side)."""

    def __init__(self, n_s):
        self.mean = np.zeros((n_s,), dtype=np.float32)
        self.std = np.zeros((n_s,), dtype=np.float32)
        self.stdd = np.zeros((n_s,), dtype=np.float32)
        self.n = 0

    def __call__(self, x):
        x = np.asarray(x)
        self.n += 1
        if self.n == 1:
            self.mean = x
        else:
            old_mean = self.mean.copy()
            self.mean = old_mean + ((x - old_mean) / self.n).astype(np.float32)
            self.stdd = self.stdd + (x - old_mean) * (x - self.mean)
        if self.n > 1:
            self.std = np.sqrt(self.stdd / (self.n - 1))
        else:
            self.std = self.mean
        x = x - self.mean
        x = x / (self.std + 1e-08)
        return np.clip(x, -5, +5)


class NNARandomBPallas:
    """JAX/Pallas port of NN_a_random_b (acting forward path only)."""

    def __init__(self, seed=0):
        self.consts = _init_params(jax.random.PRNGKey(seed))
        self.nomalize = Nomalize(4)
        self._seed0 = int(seed) * 2654435 + 12345
        self._step = 0
        self.previous_state = None
        self.previous_action = None
        self.memory = [[], [], [], []]
        # TODO(synk): PPO.train() (Adam updates, GAE) is training-time only and is not
        # part of the acting forward pass; it is not ported to Pallas here.

    def forward(self, observation):
        state, d = observation
        state = np.asarray(state, np.float32)

        # Running normalization must stay on the host (stateful, feeds previous_state).
        state_n = self.nomalize(state)

        # Single packed input block: raw state for the IR net, normalized state for the
        # actor.  Sublanes 1..7 are free and could carry up to 7 extra samples per call.
        x = np.zeros((B_PAD, D_PAD), np.float32)
        x[0, 0:4] = state
        x[0, 4:8] = state_n

        self._step += 1
        seed = jnp.asarray([(self._seed0 + self._step) & 0x7FFFFFFF], dtype=jnp.int32)

        out_dev = _run_step(seed, jnp.asarray(x), self.consts)
        out = np.asarray(jax.block_until_ready(out_dev))   # single fetch / sync per step

        reward = np.float32(out[0, 0])   # IR head is linear (no output activation) -> raw logit
        mu = float(out[8, 1])            # sigmoid(actor mu logit)
        u = float(out[16, 0])            # uniform for Bernoulli(mu)

        # PPO bookkeeping (mask/memory) — plain Python, matches reference semantics.
        mask = 1.0 - float(d)
        if self.previous_state is not None:
            self.memory[0].append(self.previous_state)
            self.memory[1].append(self.previous_action)
            self.memory[2].append(np.asarray([reward], np.float32))
            self.memory[3].append(mask)

        # Bernoulli(mu).sample(): uniform came from the in-kernel hash, compare on host.
        action = int(u < mu)

        self.previous_action = action
        self.previous_state = state_n
        return action


# ------------------------------------------------------------------ main
if __name__ == "__main__":
    key = jax.random.PRNGKey(0)
    state = np.asarray(jax.random.normal(key, (4,), dtype=jnp.float32))
    done = False

    model = NNARandomBPallas(seed=0)
    action = model.forward((state, done))
    # Second step exercises the normalizer-update / memory path as well.
    state2 = np.asarray(jax.random.normal(jax.random.PRNGKey(2), (4,), dtype=jnp.float32))
    action2 = model.forward((state2, done))

    assert action in (0, 1) and action2 in (0, 1)
    print("KERNEL_OK")
</pallas_src>

<mosaic_0001>
module attributes {stable_mosaic.version = 11 : i64} {
  func.func @_fused_policy_kernel(%arg0: memref<1xi32, #tpu.memory_space<smem>>, %arg1: memref<8x128xf32, #tpu.memory_space<vmem>>, %arg2: memref<416x128xf32, #tpu.memory_space<vmem>>, %arg3: memref<24x128xf32, #tpu.memory_space<vmem>>) attributes {dimension_semantics = [], scalar_prefetch = 0 : i64, scratch_operands = 0 : i64, tpu.core_type = #tpu.core_type<tc>} {
    %c0 = arith.constant 0 : index
    %c0_0 = arith.constant 0 : index
    %0 = vector.load %arg1[%c0, %c0_0] : memref<8x128xf32, #tpu.memory_space<vmem>>, vector<8x128xf32>
    %c0_1 = arith.constant 0 : index
    %c0_2 = arith.constant 0 : index
    %1 = vector.load %arg2[%c0_1, %c0_2] : memref<416x128xf32, #tpu.memory_space<vmem>>, vector<128x128xf32>
    %c128 = arith.constant 128 : index
    %c0_3 = arith.constant 0 : index
    %2 = vector.load %arg2[%c128, %c0_3] : memref<416x128xf32, #tpu.memory_space<vmem>>, vector<128x128xf32>
    %c256 = arith.constant 256 : index
    %c0_4 = arith.constant 0 : index
    %3 = vector.load %arg2[%c256, %c0_4] : memref<416x128xf32, #tpu.memory_space<vmem>>, vector<128x128xf32>
    %c384 = arith.constant 384 : index
    %c0_5 = arith.constant 0 : index
    %4 = vector.load %arg2[%c384, %c0_5] : memref<416x128xf32, #tpu.memory_space<vmem>>, vector<8x128xf32>
    %c392 = arith.constant 392 : index
    %c0_6 = arith.constant 0 : index
    %5 = vector.load %arg2[%c392, %c0_6] : memref<416x128xf32, #tpu.memory_space<vmem>>, vector<8x128xf32>
    %c400 = arith.constant 400 : index
    %c0_7 = arith.constant 0 : index
    %6 = vector.load %arg2[%c400, %c0_7] : memref<416x128xf32, #tpu.memory_space<vmem>>, vector<8x128xf32>
    %c408 = arith.constant 408 : index
    %c0_8 = arith.constant 0 : index
    %7 = vector.load %arg2[%c408, %c0_8] : memref<416x128xf32, #tpu.memory_space<vmem>>, vector<8x128xf32>
    %cst = arith.constant dense<0.000000e+00> : vector<8x128xf32>
    %8 = tpu.matmul %0, %1, %cst {dimension_numbers = #tpu.dot_dimension_numbers<[1], [0], [0], [1], [0, 0, 1, 1], [], []>} : vector<8x128xf32>, vector<128x128xf32>, vector<8x128xf32> -> vector<8x128xf32>
    %9 = arith.addf %8, %4 : vector<8x128xf32>
    %10 = math.tanh %9 : vector<8x128xf32>
    %cst_9 = arith.constant dense<0.000000e+00> : vector<8x128xf32>
    %11 = tpu.matmul %10, %2, %cst_9 {dimension_numbers = #tpu.dot_dimension_numbers<[1], [0], [0], [1], [0, 0, 1, 1], [], []>} : vector<8x128xf32>, vector<128x128xf32>, vector<8x128xf32> -> vector<8x128xf32>
    %12 = arith.addf %11, %5 : vector<8x128xf32>
    %13 = math.tanh %12 : vector<8x128xf32>
    %14 = arith.mulf %13, %7 : vector<8x128xf32>
    %cst_10 = arith.constant dense<0.000000e+00> : vector<8x128xf32>
    %15 = tpu.matmul %14, %3, %cst_10 {dimension_numbers = #tpu.dot_dimension_numbers<[1], [0], [0], [1], [0, 0, 1, 1], [], []>} : vector<8x128xf32>, vector<128x128xf32>, vector<8x128xf32> -> vector<8x128xf32>
    %16 = arith.addf %15, %6 : vector<8x128xf32>
    %17 = arith.negf %16 : vector<8x128xf32>
    %18 = math.exp %17 : vector<8x128xf32>
    %cst_11 = arith.constant 1.000000e+00 : f32
    %19 = vector.broadcast %cst_11 : f32 to vector<8x128xf32>
    %20 = arith.addf %19, %18 : vector<8x128xf32>
    %21 = arith.divf %19, %20 : vector<8x128xf32>
    %c0_12 = arith.constant 0 : index
    %22 = memref.load %arg0[%c0_12] : memref<1xi32, #tpu.memory_space<smem>>
    %c-1640531527_i32 = arith.constant -1640531527 : i32
    %23 = arith.muli %22, %c-1640531527_i32 : i32
    %24 = tpu.iota {dimensions = array<i32: 0>} : vector<8x128xi32>
    %c128_i32 = arith.constant 128 : i32
    %25 = vector.broadcast %c128_i32 : i32 to vector<8x128xi32>
    %26 = arith.muli %24, %25 : vector<8x128xi32>
    %27 = tpu.iota {dimensions = array<i32: 1>} : vector<8x128xi32>
    %28 = arith.addi %26, %27 : vector<8x128xi32>
    %29 = vector.broadcast %23 : i32 to vector<8x128xi32>
    %30 = arith.xori %28, %29 : vector<8x128xi32>
    %c16_i32 = arith.constant 16 : i32
    %31 = vector.broadcast %c16_i32 : i32 to vector<8x128xi32>
    %32 = arith.shrui %30, %31 : vector<8x128xi32>
    %33 = arith.xori %30, %32 : vector<8x128xi32>
    %c-2048144789_i32 = arith.constant -2048144789 : i32
    %34 = vector.broadcast %c-2048144789_i32 : i32 to vector<8x128xi32>
    %35 = arith.muli %33, %34 : vector<8x128xi32>
    %c13_i32 = arith.constant 13 : i32
    %36 = vector.broadcast %c13_i32 : i32 to vector<8x128xi32>
    %37 = arith.shrui %35, %36 : vector<8x128xi32>
    %38 = arith.xori %35, %37 : vector<8x128xi32>
    %c-1028477387_i32 = arith.constant -1028477387 : i32
    %39 = vector.broadcast %c-1028477387_i32 : i32 to vector<8x128xi32>
    %40 = arith.muli %38, %39 : vector<8x128xi32>
    %c16_i32_13 = arith.constant 16 : i32
    %41 = vector.broadcast %c16_i32_13 : i32 to vector<8x128xi32>
    %42 = arith.shrui %40, %41 : vector<8x128xi32>
    %43 = arith.xori %40, %42 : vector<8x128xi32>
    %c8388607_i32 = arith.constant 8388607 : i32
    %44 = vector.broadcast %c8388607_i32 : i32 to vector<8x128xi32>
    %45 = arith.andi %43, %44 : vector<8x128xi32>
    %46 = arith.sitofp %45 : vector<8x128xi32> to vector<8x128xf32>
    %cst_14 = arith.constant 1.1920929E-7 : f32
    %47 = vector.broadcast %cst_14 : f32 to vector<8x128xf32>
    %48 = arith.mulf %46, %47 : vector<8x128xf32>
    %c0_15 = arith.constant 0 : index
    %c0_16 = arith.constant 0 : index
    %49 = vector.load %arg3[%c0_15, %c0_16] : memref<24x128xf32, #tpu.memory_space<vmem>>, vector<8x128xf32>
    tpu.vector_store %arg3[%c0_15, %c0_16], %16 {strides = array<i32>} : memref<24x128xf32, #tpu.memory_space<vmem>>, vector<8x128xf32>,
    %c8 = arith.constant 8 : index
    %c0_17 = arith.constant 0 : index
    %50 = vector.load %arg3[%c8, %c0_17] : memref<24x128xf32, #tpu.memory_space<vmem>>, vector<8x128xf32>
    tpu.vector_store %arg3[%c8, %c0_17], %21 {strides = array<i32>} : memref<24x128xf32, #tpu.memory_space<vmem>>, vector<8x128xf32>,
    %c16 = arith.constant 16 : index
    %c0_18 = arith.constant 0 : index
    %51 = vector.load %arg3[%c16, %c0_18] : memref<24x128xf32, #tpu.memory_space<vmem>>, vector<8x128xf32>
    tpu.vector_store %arg3[%c16, %c0_18], %48 {strides = array<i32>} : memref<24x128xf32, #tpu.memory_space<vmem>>, vector<8x128xf32>,
    return
  }
}

</mosaic_0001>

<llo_original>
// kernel: _run_step.1
$region0: #{_run_step.1}
  #allocation0 [shape = 'u32[]', space=smem, size = 0x4, offset = 0x4, fixed_abs, tag = 'smem constant byte address 0x4 - core index']
  #allocation1 [shape = 'u32[144,128]{1,0:T(1,128)}', space=vmem, size = 0x12000, scoped, tag = 'internal scratch']
  #allocation2 [shape = 's32[1]{0:T(128)S(6)}', space=smem, size = 0x200, scoped, tag = 'scoped memory for _run_step.1']
  %s0 = inlined_call_operand.<no memory space> [shape: s32[1], index: 0, kind: input, shape index: {}]
  %s1 = inlined_call_operand.hbm [shape: f32[8,128], index: 1, kind: input, shape index: {}]
  %s2 = inlined_call_operand.hbm [shape: f32[416,128], index: 2, kind: input, shape index: {}]
  %s3 = inlined_call_operand.hbm [shape: f32[24,128], index: 3, kind: output, shape index: {}]
  %s4 = sld [smem:[#allocation0]]
  $region30: #{_run_step.1} parent=0
    _
  %s6 = ssub.s32 1, %s4
  %s7 = scalar_select 0, %s6, %s4
  %8 = sst [smem:[#allocation2]] %s0
  $region1: #{_run_step.1} parent=0
    #allocation3 [shape = 'u8[4096]{0}', space=vmem, size = 0x1000, scoped, tag = 'input window, operand 1, single buffered']
    #allocation4 [shape = 's32[1]{0}', space=sflag, size = 0x4, scoped, tag = 'scoped memory for _run_step.1']
    #allocation5 [shape = 's32[1]{0}', space=sflag, size = 0x4, scoped, tag = 'scoped memory for _run_step.1']
    #allocation6 [shape = 'u8[212992]{0}', space=vmem, size = 0x34000, scoped, tag = 'input window, operand 2, single buffered']
    #allocation7 [shape = 's32[1]{0}', space=sflag, size = 0x4, scoped, tag = 'scoped memory for _run_step.1']
    #allocation8 [shape = 'u8[12288]{0}', space=vmem, size = 0x3000, scoped, tag = 'output window, operand 0, single buffered']
    %9 = vsyncpa [#allocation4], 0
    %10 = vsyncpa [#allocation7], 0
    %11 = vsyncpa [#allocation5], 0
    // Predicated region
    $region2: #{_run_step.1} parent=1 // pred_check
      _
    $region3: #{_run_step.1} parent=1 // pred_check_branch
      %13 = sbr.rel (0) target = $region5
    $region4: #{_run_step.1} parent=1 // pred_region
      _
    $region5: #{_run_step.1} parent=1 // pred_fallthru
      _
    // Predicated region
    $region6: #{_run_step.1} parent=1 // pred_check
      _
    $region7: #{_run_step.1} parent=1 // pred_check_branch
      %15 = sbr.rel (0) target = $region9
    $region8: #{_run_step.1} parent=1 // pred_region
      %s17 = ssub.s32 128, 128
      %18 = vsyncadd [#allocation4], %s17
      %s20 = sshll.u32 [#allocation3], 4
      %s21 = int_to_ptr.vmem [resolvable:$true] %s20
      %23 = dma.hbm_to_vmem [thread:$0]  %s1, 128, %s21, [#allocation4]
    $region9: #{_run_step.1} parent=1 // pred_fallthru
      _
    // Predicated region
    $region10: #{_run_step.1} parent=1 // pred_check
      _
    $region11: #{_run_step.1} parent=1 // pred_check_branch
      %25 = sbr.rel (0) target = $region13
    $region12: #{_run_step.1} parent=1 // pred_region
      %s27 = ssub.s32 6656, 6656
      %28 = vsyncadd [#allocation7], %s27
      %s29 = sshll.u32 [#allocation6], 4
      %s30 = int_to_ptr.vmem [resolvable:$true] %s29
      %35 = dma.hbm_to_vmem [thread:$0]  %s2, 6656, %s30, [#allocation7], 128, 128, 8
    $region13: #{_run_step.1} parent=1 // pred_fallthru
      _
    // Predicated region
    $region14: #{_run_step.1} parent=1 // pred_check
      _
    $region15: #{_run_step.1} parent=1 // pred_check_branch
      %37 = sbr.rel (0) target = $region17
    $region16: #{_run_step.1} parent=1 // pred_region
      %38 = dma.done [#allocation4], 128
    $region17: #{_run_step.1} parent=1 // pred_fallthru
      _
    // Predicated region
    $region18: #{_run_step.1} parent=1 // pred_check
      _
    $region19: #{_run_step.1} parent=1 // pred_check_branch
      %40 = sbr.rel (0) target = $region21
    $region20: #{_run_step.1} parent=1 // pred_region
      %41 = dma.done [#allocation7], 6656
    $region21: #{_run_step.1} parent=1 // pred_fallthru
      _
    %v42 = vld [vmem:[#allocation3] sm:$0xff]
    %v43 = vld [vmem:[#allocation6] sm:$0xff]
    %v44 = vld [vmem:[#allocation6 + $0x8] sm:$0xff]
    %v45 = vld [vmem:[#allocation6 + $0x10] sm:$0xff]
    %v46 = vld [vmem:[#allocation6 + $0x18] sm:$0xff]
    %v47 = vld [vmem:[#allocation6 + $0x20] sm:$0xff]
    %v48 = vld [vmem:[#allocation6 + $0x28] sm:$0xff]
    %v49 = vld [vmem:[#allocation6 + $0x30] sm:$0xff]
    %v50 = vld [vmem:[#allocation6 + $0x38] sm:$0xff]
    %v51 = vld [vmem:[#allocation6 + $0x40] sm:$0xff]
    %v52 = vld [vmem:[#allocation6 + $0x48] sm:$0xff]
    %v53 = vld [vmem:[#allocation6 + $0x50] sm:$0xff]
    %v54 = vld [vmem:[#allocation6 + $0x58] sm:$0xff]
    %v55 = vld [vmem:[#allocation6 + $0x60] sm:$0xff]
    %v56 = vld [vmem:[#allocation6 + $0x68] sm:$0xff]
    %v57 = vld [vmem:[#allocation6 + $0x70] sm:$0xff]
    %v58 = vld [vmem:[#allocation6 + $0x78] sm:$0xff]
    %v59 = vld [vmem:[#allocation6 + $0x80] sm:$0xff]
    %v60 = vld [vmem:[#allocation6 + $0x88] sm:$0xff]
    %v61 = vld [vmem:[#allocation6 + $0x90] sm:$0xff]
    %v62 = vld [vmem:[#allocation6 + $0x98] sm:$0xff]
    %v63 = vld [vmem:[#allocation6 + $0xa0] sm:$0xff]
    %v64 = vld [vmem:[#allocation6 + $0xa8] sm:$0xff]
    %v65 = vld [vmem:[#allocation6 + $0xb0] sm:$0xff]
    %v66 = vld [vmem:[#allocation6 + $0xb8] sm:$0xff]
    %v67 = vld [vmem:[#allocation6 + $0xc0] sm:$0xff]
    %v68 = vld [vmem:[#allocation6 + $0xc8] sm:$0xff]
    %v69 = vld [vmem:[#allocation6 + $0xd0] sm:$0xff]
    %v70 = vld [vmem:[#allocation6 + $0xd8] sm:$0xff]
    %v71 = vld [vmem:[#allocation6 + $0xe0] sm:$0xff]
    %v72 = vld [vmem:[#allocation6 + $0xe8] sm:$0xff]
    %v73 = vld [vmem:[#allocation6 + $0xf0] sm:$0xff]
    %v74 = vld [vmem:[#allocation6 + $0xf8] sm:$0xff]
    %v75 = vld [vmem:[#allocation6 + $0x100] sm:$0xff]
    %v76 = vld [vmem:[#allocation6 + $0x108] sm:$0xff]
    %v77 = vld [vmem:[#allocation6 + $0x110] sm:$0xff]
    %v78 = vld [vmem:[#allocation6 + $0x118] sm:$0xff]
    %v79 = vld [vmem:[#allocation6 + $0x120] sm:$0xff]
    %v80 = vld [vmem:[#allocation6 + $0x128] sm:$0xff]
    %v81 = vld [vmem:[#allocation6 + $0x130] sm:$0xff]
    %v82 = vld [vmem:[#allocation6 + $0x138] sm:$0xff]
    %v83 = vld [vmem:[#allocation6 + $0x140] sm:$0xff]
    %v84 = vld [vmem:[#allocation6 + $0x148] sm:$0xff]
    %v85 = vld [vmem:[#allocation6 + $0x150] sm:$0xff]
    %v86 = vld [vmem:[#allocation6 + $0x158] sm:$0xff]
    %v87 = vld [vmem:[#allocation6 + $0x160] sm:$0xff]
    %v88 = vld [vmem:[#allocation6 + $0x168] sm:$0xff]
    %v89 = vld [vmem:[#allocation6 + $0x170] sm:$0xff]
    %v90 = vld [vmem:[#allocation6 + $0x178] sm:$0xff]
    %v91 = vld [vmem:[#allocation6 + $0x180] sm:$0xff]
    %v92 = vld [vmem:[#allocation6 + $0x188] sm:$0xff]
    %v93 = vld [vmem:[#allocation6 + $0x190] sm:$0xff]
    %v94 = vld [vmem:[#allocation6 + $0x198] sm:$0xff]
    %95 = vmatprep.subr.mxu0 0.0
    %96 = vmatpush1.msra.mxu0 %v43
    %97 = vmatprep.subr.mxu0 0.0
    %98 = vmatpush1.msra.mxu0 %v44
    %99 = vmatprep.subr.mxu0 0.0
    %100 = vmatpush1.msra.mxu0 %v45
    %101 = vmatprep.subr.mxu0 0.0
    %102 = vmatpush1.msra.mxu0 %v46
    %103 = vmatprep.subr.mxu0 0.0
    %104 = vmatpush1.msra.mxu0 %v47
    %105 = vmatprep.subr.mxu0 0.0
    %106 = vmatpush1.msra.mxu0 %v48
    %107 = vmatprep.subr.mxu0 0.0
    %108 = vmatpush1.msra.mxu0 %v49
    %109 = vmatprep.subr.mxu0 0.0
    %110 = vmatpush1.msra.mxu0 %v50
    %111 = vmatprep.subr.mxu0 0.0
    %112 = vmatpush1.msra.mxu0 %v51
    %113 = vmatprep.subr.mxu0 0.0
    %114 = vmatpush1.msra.mxu0 %v52
    %115 = vmatprep.subr.mxu0 0.0
    %116 = vmatpush1.msra.mxu0 %v53
    %117 = vmatprep.subr.mxu0 0.0
    %118 = vmatpush1.msra.mxu0 %v54
    %119 = vmatprep.subr.mxu0 0.0
    %120 = vmatpush1.msra.mxu0 %v55
    %121 = vmatprep.subr.mxu0 0.0
    %122 = vmatpush1.msra.mxu0 %v56
    %123 = vmatprep.subr.mxu0 0.0
    %124 = vmatpush1.msra.mxu0 %v57
    %125 = vmatprep.subr.mxu0 0.0
    %126 = vmatpush1.msra.mxu0 %v58
    %127 = vmatprep.subr.mxu0 0.0
    %128 = vmatpush1.msra.mxu0 0.0
    %129 = vmatprep.subr.mxu0 0.0
    %130 = vmatpush1.msra.mxu0 0.0
    %131 = vmatprep.subr.mxu0 0.0
    %132 = vmatpush1.msra.mxu0 0.0
    %133 = vmatprep.subr.mxu0 0.0
    %134 = vmatpush1.msra.mxu0 0.0
    %135 = vmatprep.subr.mxu0 0.0
    %136 = vmatpush1.msra.mxu0 0.0
    %137 = vmatprep.subr.mxu0 0.0
    %138 = vmatpush1.msra.mxu0 0.0
    %139 = vmatprep.subr.mxu0 0.0
    %140 = vmatpush1.msra.mxu0 0.0
    %141 = vmatprep.subr.mxu0 0.0
    %142 = vmatpush1.msra.mxu0 0.0
    %143 = vmatprep.subr.mxu0 0.0
    %144 = vmatpush1.msra.mxu0 0.0
    %145 = vmatprep.subr.mxu0 0.0
    %146 = vmatpush1.msra.mxu0 0.0
    %147 = vmatprep.subr.mxu0 0.0
    %148 = vmatpush1.msra.mxu0 0.0
    %149 = vmatprep.subr.mxu0 0.0
    %150 = vmatpush1.msra.mxu0 0.0
    %151 = vmatprep.subr.mxu0 0.0
    %152 = vmatpush1.msra.mxu0 0.0
    %153 = vmatprep.subr.mxu0 0.0
    %154 = vmatpush1.msra.mxu0 0.0
    %155 = vmatprep.subr.mxu0 0.0
    %156 = vmatpush1.msra.mxu0 0.0
    %157 = vmatprep.subr.mxu0 0.0
    %158 = vmatpush1.msra.mxu0 0.0
    %159 = vmatprep.mubr.f32.mxu0 0.0
    %160 = vmatmul.mubr.f32.gmra.mrb[0].mxu0 %v42
    %v161 = vpop.f32.mrb[0].mxu0
    %v162 = vadd.f32 %v91, %v161
    %v163 = vpop.f32.mrb[0].mxu0
    %164 = vdwg.mxu0
    %v165 = vtanh.pop %v162
    %166 = vmatprep.subr.mxu0 0.0
    %167 = vmatpush1.msra.mxu0 %v59
    %168 = vmatprep.subr.mxu0 0.0
    %169 = vmatpush1.msra.mxu0 %v60
    %170 = vmatprep.subr.mxu0 0.0
    %171 = vmatpush1.msra.mxu0 %v61
    %172 = vmatprep.subr.mxu0 0.0
    %173 = vmatpush1.msra.mxu0 %v62
    %174 = vmatprep.subr.mxu0 0.0
    %175 = vmatpush1.msra.mxu0 %v63
    %176 = vmatprep.subr.mxu0 0.0
    %177 = vmatpush1.msra.mxu0 %v64
    %178 = vmatprep.subr.mxu0 0.0
    %179 = vmatpush1.msra.mxu0 %v65
    %180 = vmatprep.subr.mxu0 0.0
    %181 = vmatpush1.msra.mxu0 %v66
    %182 = vmatprep.subr.mxu0 0.0
    %183 = vmatpush1.msra.mxu0 %v67
    %184 = vmatprep.subr.mxu0 0.0
    %185 = vmatpush1.msra.mxu0 %v68
    %186 = vmatprep.subr.mxu0 0.0
    %187 = vmatpush1.msra.mxu0 %v69
    %188 = vmatprep.subr.mxu0 0.0
    %189 = vmatpush1.msra.mxu0 %v70
    %190 = vmatprep.subr.mxu0 0.0
    %191 = vmatpush1.msra.mxu0 %v71
    %192 = vmatprep.subr.mxu0 0.0
    %193 = vmatpush1.msra.mxu0 %v72
    %194 = vmatprep.subr.mxu0 0.0
    %195 = vmatpush1.msra.mxu0 %v73
    %196 = vmatprep.subr.mxu0 0.0
    %197 = vmatpush1.msra.mxu0 %v74
    %198 = vmatprep.subr.mxu0 0.0
    %199 = vmatpush1.msra.mxu0 0.0
    %200 = vmatprep.subr.mxu0 0.0
    %201 = vmatpush1.msra.mxu0 0.0
    %202 = vmatprep.subr.mxu0 0.0
    %203 = vmatpush1.msra.mxu0 0.0
    %204 = vmatprep.subr.mxu0 0.0
    %205 = vmatpush1.msra.mxu0 0.0
    %206 = vmatprep.subr.mxu0 0.0
    %207 = vmatpush1.msra.mxu0 0.0
    %208 = vmatprep.subr.mxu0 0.0
    %209 = vmatpush1.msra.mxu0 0.0
    %210 = vmatprep.subr.mxu0 0.0
    %211 = vmatpush1.msra.mxu0 0.0
    %212 = vmatprep.subr.mxu0 0.0
    %213 = vmatpush1.msra.mxu0 0.0
    %214 = vmatprep.subr.mxu0 0.0
    %215 = vmatpush1.msra.mxu0 0.0
    %216 = vmatprep.subr.mxu0 0.0
    %217 = vmatpush1.msra.mxu0 0.0
    %218 = vmatprep.subr.mxu0 0.0
    %219 = vmatpush1.msra.mxu0 0.0
    %220 = vmatprep.subr.mxu0 0.0
    %221 = vmatpush1.msra.mxu0 0.0
    %222 = vmatprep.subr.mxu0 0.0
    %223 = vmatpush1.msra.mxu0 0.0
    %224 = vmatprep.subr.mxu0 0.0
    %225 = vmatpush1.msra.mxu0 0.0
    %226 = vmatprep.subr.mxu0 0.0
    %227 = vmatpush1.msra.mxu0 0.0
    %228 = vmatprep.subr.mxu0 0.0
    %229 = vmatpush1.msra.mxu0 0.0
    %230 = vmatprep.mubr.f32.mxu0 0.0
    %231 = vmatmul.mubr.f32.gmra.mrb[0].mxu0 %v165
    %v232 = vpop.f32.mrb[0].mxu0
    %v233 = vadd.f32 %v92, %v232
    %v234 = vpop.f32.mrb[0].mxu0
    %235 = vdwg.mxu0
    %v236 = vtanh.pop %v233
    %v237 = vmul.f32 %v236, %v94
    %238 = vmatprep.subr.mxu0 0.0
    %239 = vmatpush1.msra.mxu0 %v75
    %240 = vmatprep.subr.mxu0 0.0
    %241 = vmatpush1.msra.mxu0 %v76
    %242 = vmatprep.subr.mxu0 0.0
    %243 = vmatpush1.msra.mxu0 %v77
    %244 = vmatprep.subr.mxu0 0.0
    %245 = vmatpush1.msra.mxu0 %v78
    %246 = vmatprep.subr.mxu0 0.0
    %247 = vmatpush1.msra.mxu0 %v79
    %248 = vmatprep.subr.mxu0 0.0
    %249 = vmatpush1.msra.mxu0 %v80
    %250 = vmatprep.subr.mxu0 0.0
    %251 = vmatpush1.msra.mxu0 %v81
    %252 = vmatprep.subr.mxu0 0.0
    %253 = vmatpush1.msra.mxu0 %v82
    %254 = vmatprep.subr.mxu0 0.0
    %255 = vmatpush1.msra.mxu0 %v83
    %256 = vmatprep.subr.mxu0 0.0
    %257 = vmatpush1.msra.mxu0 %v84
    %258 = vmatprep.subr.mxu0 0.0
    %259 = vmatpush1.msra.mxu0 %v85
    %260 = vmatprep.subr.mxu0 0.0
    %261 = vmatpush1.msra.mxu0 %v86
    %262 = vmatprep.subr.mxu0 0.0
    %263 = vmatpush1.msra.mxu0 %v87
    %264 = vmatprep.subr.mxu0 0.0
    %265 = vmatpush1.msra.mxu0 %v88
    %266 = vmatprep.subr.mxu0 0.0
    %267 = vmatpush1.msra.mxu0 %v89
    %268 = vmatprep.subr.mxu0 0.0
    %269 = vmatpush1.msra.mxu0 %v90
    %270 = vmatprep.subr.mxu0 0.0
    %271 = vmatpush1.msra.mxu0 0.0
    %272 = vmatprep.subr.mxu0 0.0
    %273 = vmatpush1.msra.mxu0 0.0
    %274 = vmatprep.subr.mxu0 0.0
    %275 = vmatpush1.msra.mxu0 0.0
    %276 = vmatprep.subr.mxu0 0.0
    %277 = vmatpush1.msra.mxu0 0.0
    %278 = vmatprep.subr.mxu0 0.0
    %279 = vmatpush1.msra.mxu0 0.0
    %280 = vmatprep.subr.mxu0 0.0
    %281 = vmatpush1.msra.mxu0 0.0
    %282 = vmatprep.subr.mxu0 0.0
    %283 = vmatpush1.msra.mxu0 0.0
    %284 = vmatprep.subr.mxu0 0.0
    %285 = vmatpush1.msra.mxu0 0.0
    %286 = vmatprep.subr.mxu0 0.0
    %287 = vmatpush1.msra.mxu0 0.0
    %288 = vmatprep.subr.mxu0 0.0
    %289 = vmatpush1.msra.mxu0 0.0
    %290 = vmatprep.subr.mxu0 0.0
    %291 = vmatpush1.msra.mxu0 0.0
    %292 = vmatprep.subr.mxu0 0.0
    %293 = vmatpush1.msra.mxu0 0.0
    %294 = vmatprep.subr.mxu0 0.0
    %295 = vmatpush1.msra.mxu0 0.0
    %296 = vmatprep.subr.mxu0 0.0
    %297 = vmatpush1.msra.mxu0 0.0
    %298 = vmatprep.subr.mxu0 0.0
    %299 = vmatpush1.msra.mxu0 0.0
    %300 = vmatprep.subr.mxu0 0.0
    %301 = vmatpush1.msra.mxu0 0.0
    %302 = vmatprep.mubr.f32.mxu0 0.0
    %303 = vmatmul.mubr.f32.gmra.mrb[0].mxu0 %v237
    %v304 = vpop.f32.mrb[0].mxu0
    %v305 = vadd.f32 %v93, %v304
    %v306 = vpop.f32.mrb[0].mxu0
    %307 = vdwg.mxu0
    %v308 = vxor.u32 %v305, 2147483648
    %v309 = vmul.f32 %v308, 1.442695
    %v310 = vpow.pop %v309
    %v311 = vadd.f32 %v310, 1.0
    %v312 = vrcp.pop %v311
    %v313 = vmul.f32 1.0, %v312
    %s314 = sld [smem:[#allocation2]]
    %s315 = smul.u32 %s314, 2654435769
    %v316 = vlaneseq
    %v317 = vshrl.u32 %v316, 7
    %v318 = vmul.u32 %v317, 128
    %v319 = vlaneseq
    %v320 = vand.u32 %v319, 127
    %v321 = vadd.s32 %v318, %v320
    %v322 = vstv %s315
    %v323 = vxor.u32 %v321, %v322
    %v324 = vshrl.u32 %v323, 16
    %v325 = vxor.u32 %v323, %v324
    %v326 = vmul.u32 %v325, 2246822507
    %v327 = vshrl.u32 %v326, 13
    %v328 = vxor.u32 %v326, %v327
    %v329 = vmul.u32 %v328, 3266489909
    %v330 = vshrl.u32 %v329, 16
    %v331 = vxor.u32 %v329, %v330
    %v332 = vand.u32 %v331, 8388607
    %v333 = vcvt.s32.f32 %v332
    %v334 = vmul.f32 %v333, 1.1920929e-07
    %335 = vst [vmem:[#allocation8] sm:$0xff] %v305
    %336 = vst [vmem:[#allocation8 + $0x8] sm:$0xff] %v313
    %337 = vst [vmem:[#allocation8 + $0x10] sm:$0xff] %v334
    // Predicated region
    $region22: #{_run_step.1} parent=1 // pred_check
      _
    $region23: #{_run_step.1} parent=1 // pred_check_branch
      %339 = sbr.rel (0) target = $region25
    $region24: #{_run_step.1} parent=1 // pred_region
      %s341 = ssub.s32 384, 384
      %342 = vsyncadd [#allocation5], %s341
      %s343 = sshll.u32 [#allocation8], 4
      %s344 = int_to_ptr.vmem [resolvable:$true] %s343
      %349 = dma.vmem_to_hbm [thread:$0]  %s344, 384, %s3, [#allocation5], 128, 128, 8
    $region25: #{_run_step.1} parent=1 // pred_fallthru
      _
    // Predicated region
    $region26: #{_run_step.1} parent=1 // pred_check
      _
    $region27: #{_run_step.1} parent=1 // pred_check_branch
      %351 = sbr.rel (0) target = $region29
    $region28: #{_run_step.1} parent=1 // pred_region
      %352 = dma.done [#allocation5], 384
    $region29: #{_run_step.1} parent=1 // pred_fallthru
      _
    %353 = vsyncpa [#allocation4], 1
    %354 = vsyncpa [#allocation7], 1
    %355 = vsyncpa [#allocation5], 1

</llo_original>
